<compile_context>
chip_gen: v6e
topology: v6e:2x2x1
jax: 0.10.0
libtpu: 0.0.40
codegen_flags: <defaults>
</compile_context>

<pallas_src>
import functools

import jax
import jax.numpy as jnp
from jax.experimental import pallas as pl
from jax.experimental.pallas import tpu as pltpu


def mlp_kernel(x_ref, w1_ref, b1_ref, w2_ref, b2_ref, w3_ref, b3_ref, o_ref,
               *, chunk):
    """Fused forward pass for one batch block.

    x : (BLOCK_B, IN) f32 (native layout; ragged rows may contain garbage)
    w1: (H1, IN) bf16   b1: (H1, 1) f32
    w2: (H2, H1) bf16   b2: (H2, 1) f32
    w3: (H2, 1)  f32    b3: (1, 1)  f32
    o : (1, BLOCK_B) f32 (lane-dense in batch)
    """
    block_b = x_ref.shape[0]

    # Hoist parameter loads out of the chunk loop (all tiny, fully VMEM-resident).
    w1 = w1_ref[...]
    b1 = b1_ref[...]
    w2 = w2_ref[...]
    b2 = b2_ref[...]
    w3 = w3_ref[...]
    b3 = b3_ref[...]

    # Static chunking of the lane (batch) axis keeps the live (H1, chunk) f32
    # intermediate at ~16 vregs even for large blocks.
    for s in range(0, block_b, chunk):
        c = min(chunk, block_b - s)

        xc = x_ref[pl.ds(s, c), :].astype(jnp.bfloat16)          # (c, IN)

        # Layer 1: h = W1 @ xc^T + b1  (contract on IN; lanes = batch).
        # Dropout = identity in eval mode.
        h = jax.lax.dot_general(
            w1, xc, (((1,), (1,)), ((), ())),
            preferred_element_type=jnp.float32) + b1              # (H1, c)
        h = jnp.maximum(h, 0.0)

        # Layer 2: Linear + ReLU (Dropout = identity).
        h = jnp.dot(w2, h.astype(jnp.bfloat16),
                    preferred_element_type=jnp.float32) + b2      # (H2, c)
        h = jnp.maximum(h, 0.0)

        # Output layer (H2 -> 1): sublane reduce instead of an N=1 MXU matmul.
        logits = jnp.sum(h * w3, axis=0, keepdims=True) + b3      # (1, c)

        # Exact sigmoid; lane-dense store.
        o_ref[:, pl.ds(s, c)] = (
            1.0 / (1.0 + jnp.exp(-logits))).astype(o_ref.dtype)


def pack_params(params):
    """One-time parameter packing (hoisted out of the per-call path).

    params: [(W1,b1),(W2,b2),(W3,b3)] in PyTorch layout W:(out,in), b:(out,)
    """
    (w1, b1), (w2, b2), (w3, b3) = params
    H1 = w1.shape[0]
    H2 = w2.shape[0]
    OUT = w3.shape[0]
    assert OUT == 1, "kernel implements the output_dim==1 (sigmoid) variant"
    return {
        "w1": w1.astype(jnp.bfloat16),                       # (H1, IN)
        "b1": b1.reshape(H1, 1).astype(jnp.float32),         # (H1, 1)
        "w2": w2.astype(jnp.bfloat16),                       # (H2, H1)
        "b2": b2.reshape(H2, 1).astype(jnp.float32),         # (H2, 1)
        "w3": w3.reshape(OUT, H2).T.astype(jnp.float32),     # (H2, 1) column
        "b3": b3.reshape(1, 1).astype(jnp.float32),          # (1, 1)
    }


def healthcare_risk_predictor(x, packed, *, block_b=1024, chunk=512):
    """Wrapper: lane-dense batch blocks; all weights resident in VMEM.

    x:      (B, IN) f32 (native layout, not padded)
    packed: dict from pack_params()
    returns (B, 1) f32 probabilities.
    """
    B, IN = x.shape
    w1, b1 = packed["w1"], packed["b1"]
    w2, b2 = packed["w2"], packed["b2"]
    w3, b3 = packed["w3"], packed["b3"]
    assert w1.shape[1] == IN

    # Batch block: multiple of 128 lanes, no larger than the padded batch.
    block_b = max(128, (int(block_b) // 128) * 128)
    block_b = min(block_b, 128 * pl.cdiv(B, 128))
    chunk = max(128, (int(chunk) // 128) * 128)
    num_tiles = pl.cdiv(B, block_b)          # no forced split on single-TC chips
    B_pad = num_tiles * block_b

    kernel = functools.partial(mlp_kernel, chunk=chunk)

    def full(a):
        nd = a.ndim
        return pl.BlockSpec(a.shape, lambda i, _nd=nd: (0,) * _nd)

    out = pl.pallas_call(
        kernel,
        out_shape=jax.ShapeDtypeStruct((1, B_pad), jnp.float32),
        grid_spec=pltpu.PrefetchScalarGridSpec(
            num_scalar_prefetch=0,
            grid=(num_tiles,),
            in_specs=[
                # Ragged last block: Pallas clamps the read; garbage rows only
                # feed output lanes beyond B, which are sliced off below.
                pl.BlockSpec((block_b, IN), lambda i: (i, 0)),
                full(w1), full(b1),
                full(w2), full(b2),
                full(w3), full(b3),
            ],
            out_specs=pl.BlockSpec((1, block_b), lambda i: (0, i)),
        ),
        compiler_params=pltpu.CompilerParams(
            dimension_semantics=("parallel",)),
    )(x, w1, b1, w2, b2, w3, b3)

    return out[0, :B].reshape(B, 1)


def init_params(key, input_dim, hidden_dims, output_dim=1):
    """PyTorch-style init: W (out, in), b (out,), U(-1/sqrt(fan_in), +)."""
    dims = [input_dim] + list(hidden_dims) + [output_dim]
    params = []
    for i in range(len(dims) - 1):
        key, kw, kb = jax.random.split(key, 3)
        fan_in = dims[i]
        bound = 1.0 / jnp.sqrt(fan_in)
        w = jax.random.uniform(kw, (dims[i + 1], dims[i]),
                               minval=-bound, maxval=bound, dtype=jnp.float32)
        b = jax.random.uniform(kb, (dims[i + 1],),
                               minval=-bound, maxval=bound, dtype=jnp.float32)
        params.append((w, b))
    return params


def reference_forward(x, params):
    """Pure-JAX reference mirroring the kernel's bf16-input / f32-accum numerics."""
    (w1, b1), (w2, b2), (w3, b3) = params
    xb = x.astype(jnp.bfloat16).astype(jnp.float32)
    w1f = w1.astype(jnp.bfloat16).astype(jnp.float32)
    w2f = w2.astype(jnp.bfloat16).astype(jnp.float32)
    h = jnp.maximum(xb @ w1f.T + b1, 0.0)
    h = h.astype(jnp.bfloat16).astype(jnp.float32)
    h = jnp.maximum(h @ w2f.T + b2, 0.0)
    logits = h @ w3.T + b3
    return jax.nn.sigmoid(logits)


if __name__ == "__main__":
    # HealthcareRiskPredictor(input_dim=16, hidden_dims=[32, 32], output_dim=1)
    input_dim, hidden_dims, output_dim = 16, [32, 32], 1
    batch = 16

    key = jax.random.PRNGKey(0)
    key, kx = jax.random.split(key)
    x = jax.random.normal(kx, (batch, input_dim), dtype=jnp.float32)

    params = init_params(key, input_dim, hidden_dims, output_dim)
    packed = pack_params(params)            # one-time param packing

    predict = jax.jit(healthcare_risk_predictor)
    out = predict(x, packed)
    out = jax.block_until_ready(out)

    ref = reference_forward(x, params)
    assert out.shape == (batch, output_dim)
    assert jnp.allclose(out, ref, atol=2e-3, rtol=2e-3), "mismatch vs reference"

    print("KERNEL_OK")
</pallas_src>

<mosaic_0001>
module attributes {stable_mosaic.version = 11 : i64} {
  func.func @mlp_kernel(%arg0: i32, %arg1: memref<128x16xf32, #tpu.memory_space<vmem>>, %arg2: memref<32x16xbf16, #tpu.memory_space<vmem>>, %arg3: memref<32x1xf32, #tpu.memory_space<vmem>>, %arg4: memref<32x32xbf16, #tpu.memory_space<vmem>>, %arg5: memref<32x1xf32, #tpu.memory_space<vmem>>, %arg6: memref<32x1xf32, #tpu.memory_space<vmem>>, %arg7: memref<1x1xf32, #tpu.memory_space<vmem>>, %arg8: memref<1x128xf32, #tpu.memory_space<vmem>>) attributes {dimension_semantics = [#tpu.dimension_semantics<parallel>], iteration_bounds = array<i64: 1>, scalar_prefetch = 0 : i64, scratch_operands = 0 : i64, tpu.core_type = #tpu.core_type<tc>, window_params = [{transform_indices = @transform_0, window_bounds = array<i64: 128, 16>}, {pipeline_mode = #tpu.pipeline_mode<synchronous>, transform_indices = @transform_1, window_bounds = array<i64: 32, 16>}, {pipeline_mode = #tpu.pipeline_mode<synchronous>, transform_indices = @transform_2, window_bounds = array<i64: 32, 1>}, {pipeline_mode = #tpu.pipeline_mode<synchronous>, transform_indices = @transform_3, window_bounds = array<i64: 32, 32>}, {pipeline_mode = #tpu.pipeline_mode<synchronous>, transform_indices = @transform_4, window_bounds = array<i64: 32, 1>}, {pipeline_mode = #tpu.pipeline_mode<synchronous>, transform_indices = @transform_5, window_bounds = array<i64: 32, 1>}, {pipeline_mode = #tpu.pipeline_mode<synchronous>, transform_indices = @transform_6, window_bounds = array<i64: 1, 1>}, {transform_indices = @transform_7, window_bounds = array<i64: 1, 128>}]} {
    %c0 = arith.constant 0 : index
    %c0_0 = arith.constant 0 : index
    %0 = vector.load %arg2[%c0, %c0_0] : memref<32x16xbf16, #tpu.memory_space<vmem>>, vector<32x16xbf16>
    %c0_1 = arith.constant 0 : index
    %c0_2 = arith.constant 0 : index
    %1 = vector.load %arg3[%c0_1, %c0_2] : memref<32x1xf32, #tpu.memory_space<vmem>>, vector<32x1xf32>
    %c0_3 = arith.constant 0 : index
    %c0_4 = arith.constant 0 : index
    %2 = vector.load %arg4[%c0_3, %c0_4] : memref<32x32xbf16, #tpu.memory_space<vmem>>, vector<32x32xbf16>
    %c0_5 = arith.constant 0 : index
    %c0_6 = arith.constant 0 : index
    %3 = vector.load %arg5[%c0_5, %c0_6] : memref<32x1xf32, #tpu.memory_space<vmem>>, vector<32x1xf32>
    %c0_7 = arith.constant 0 : index
    %c0_8 = arith.constant 0 : index
    %4 = vector.load %arg6[%c0_7, %c0_8] : memref<32x1xf32, #tpu.memory_space<vmem>>, vector<32x1xf32>
    %c0_9 = arith.constant 0 : index
    %c0_10 = arith.constant 0 : index
    %5 = vector.load %arg7[%c0_9, %c0_10] : memref<1x1xf32, #tpu.memory_space<vmem>>, vector<1x1xf32>
    %c0_11 = arith.constant 0 : index
    %c0_12 = arith.constant 0 : index
    %6 = vector.load %arg1[%c0_11, %c0_12] : memref<128x16xf32, #tpu.memory_space<vmem>>, vector<128x16xf32>
    %7 = arith.truncf %6 : vector<128x16xf32> to vector<128x16xbf16>
    %cst = arith.constant dense<0.000000e+00> : vector<32x128xf32>
    %8 = tpu.matmul %0, %7, %cst {dimension_numbers = #tpu.dot_dimension_numbers<[1], [1], [0], [0], [0, 0, 1, 0], [], []>} : vector<32x16xbf16>, vector<128x16xbf16>, vector<32x128xf32> -> vector<32x128xf32>
    %9 = vector.broadcast %1 : vector<32x1xf32> to vector<32x128xf32>
    %10 = arith.addf %8, %9 : vector<32x128xf32>
    %cst_13 = arith.constant 0.000000e+00 : f32
    %11 = vector.broadcast %cst_13 : f32 to vector<32x128xf32>
    %12 = arith.maximumf %10, %11 : vector<32x128xf32>
    %13 = arith.truncf %12 : vector<32x128xf32> to vector<32x128xbf16>
    %cst_14 = arith.constant dense<0.000000e+00> : vector<32x128xf32>
    %14 = tpu.matmul %2, %13, %cst_14 {dimension_numbers = #tpu.dot_dimension_numbers<[1], [0], [0], [1], [0, 0, 1, 1], [], []>} : vector<32x32xbf16>, vector<32x128xbf16>, vector<32x128xf32> -> vector<32x128xf32>
    %15 = vector.broadcast %3 : vector<32x1xf32> to vector<32x128xf32>
    %16 = arith.addf %14, %15 : vector<32x128xf32>
    %cst_15 = arith.constant 0.000000e+00 : f32
    %17 = vector.broadcast %cst_15 : f32 to vector<32x128xf32>
    %18 = arith.maximumf %16, %17 : vector<32x128xf32>
    %19 = vector.broadcast %4 : vector<32x1xf32> to vector<32x128xf32>
    %20 = arith.mulf %18, %19 : vector<32x128xf32>
    %cst_16 = arith.constant dense<0.000000e+00> : vector<128xf32>
    %21 = vector.multi_reduction <add>, %20, %cst_16 [0] : vector<32x128xf32> to vector<128xf32>
    %22 = vector.shape_cast %21 : vector<128xf32> to vector<1x128xf32>
    %23 = vector.broadcast %5 : vector<1x1xf32> to vector<1x128xf32>
    %24 = arith.addf %22, %23 : vector<1x128xf32>
    %cst_17 = arith.constant 0.000000e+00 : f32
    %25 = vector.broadcast %cst_17 : f32 to vector<1x128xf32>
    %26 = arith.subf %25, %24 : vector<1x128xf32>
    %27 = math.exp %26 : vector<1x128xf32>
    %cst_18 = arith.constant 1.000000e+00 : f32
    %28 = vector.broadcast %cst_18 : f32 to vector<1x128xf32>
    %29 = arith.addf %28, %27 : vector<1x128xf32>
    %cst_19 = arith.constant 1.000000e+00 : f32
    %30 = vector.broadcast %cst_19 : f32 to vector<1x128xf32>
    %31 = arith.divf %30, %29 : vector<1x128xf32>
    %c0_20 = arith.constant 0 : index
    %c0_21 = arith.constant 0 : index
    %32 = vector.load %arg8[%c0_20, %c0_21] : memref<1x128xf32, #tpu.memory_space<vmem>>, vector<1x128xf32>
    tpu.vector_store %arg8[%c0_20, %c0_21], %31 {strides = array<i32>} : memref<1x128xf32, #tpu.memory_space<vmem>>, vector<1x128xf32>,
    return
  }
  func.func @transform_0(%arg0: i32) -> (i32, i32) {
    %c0_i32 = arith.constant 0 : i32
    %c0_i32_0 = arith.constant 0 : i32
    return %arg0, %c0_i32 : i32, i32
  }
  func.func @transform_1(%arg0: i32) -> (i32, i32) {
    %c0_i32 = arith.constant 0 : i32
    %c0_i32_0 = arith.constant 0 : i32
    %c0_i32_1 = arith.constant 0 : i32
    return %c0_i32, %c0_i32_0 : i32, i32
  }
  func.func @transform_2(%arg0: i32) -> (i32, i32) {
    %c0_i32 = arith.constant 0 : i32
    %c0_i32_0 = arith.constant 0 : i32
    %c0_i32_1 = arith.constant 0 : i32
    return %c0_i32, %c0_i32_0 : i32, i32
  }
  func.func @transform_3(%arg0: i32) -> (i32, i32) {
    %c0_i32 = arith.constant 0 : i32
    %c0_i32_0 = arith.constant 0 : i32
    %c0_i32_1 = arith.constant 0 : i32
    return %c0_i32, %c0_i32_0 : i32, i32
  }
  func.func @transform_4(%arg0: i32) -> (i32, i32) {
    %c0_i32 = arith.constant 0 : i32
    %c0_i32_0 = arith.constant 0 : i32
    %c0_i32_1 = arith.constant 0 : i32
    return %c0_i32, %c0_i32_0 : i32, i32
  }
  func.func @transform_5(%arg0: i32) -> (i32, i32) {
    %c0_i32 = arith.constant 0 : i32
    %c0_i32_0 = arith.constant 0 : i32
    %c0_i32_1 = arith.constant 0 : i32
    return %c0_i32, %c0_i32_0 : i32, i32
  }
  func.func @transform_6(%arg0: i32) -> (i32, i32) {
    %c0_i32 = arith.constant 0 : i32
    %c0_i32_0 = arith.constant 0 : i32
    %c0_i32_1 = arith.constant 0 : i32
    return %c0_i32, %c0_i32_0 : i32, i32
  }
  func.func @transform_7(%arg0: i32) -> (i32, i32) {
    %c0_i32 = arith.constant 0 : i32
    %c0_i32_0 = arith.constant 0 : i32
    return %c0_i32, %arg0 : i32, i32
  }
}

</mosaic_0001>

<llo_original>
// kernel: healthcare_risk_predictor.1
$region0: #{healthcare_risk_predictor.1}
  #allocation0 [shape = 'u32[]', space=smem, size = 0x4, offset = 0x4, fixed_abs, tag = 'smem constant byte address 0x4 - core index']
  #allocation1 [shape = 'u32[144,128]{1,0:T(1,128)}', space=vmem, size = 0x12000, scoped, tag = 'internal scratch']
  #allocation2 [shape = 'f32[1,1]{1,0:T(1,128)S(1)}', space=vmem, size = 0x200, scoped, tag = 'scoped memory for healthcare_risk_predictor.1']
  %s0 = inlined_call_operand.vmem [shape: f32[16,16], index: 0, kind: input, shape index: {}]
  %s1 = inlined_call_operand.vmem [shape: bf16[32,16], index: 1, kind: input, shape index: {}]
  %s2 = inlined_call_operand.vmem [shape: f32[32,1], index: 2, kind: input, shape index: {}]
  %s3 = inlined_call_operand.vmem [shape: bf16[32,32], index: 3, kind: input, shape index: {}]
  %s4 = inlined_call_operand.vmem [shape: f32[32,1], index: 4, kind: input, shape index: {}]
  %s5 = inlined_call_operand.vmem [shape: f32[32,1], index: 5, kind: input, shape index: {}]
  %s6 = inlined_call_operand.<no memory space> [shape: f32[1,1], index: 6, kind: input, shape index: {}]
  %s7 = inlined_call_operand.vmem [shape: f32[1,128], index: 7, kind: output, shape index: {}]
  %s8 = sld [smem:[#allocation0]]
  $region38: #{healthcare_risk_predictor.1} parent=0
    _
  %s10 = ssub.s32 1, %s8
  %s11 = scalar_select 0, %s10, %s8
  %v12 = vstv %s6
  %13 = vst [vmem:[#allocation2] sm:$0x1] %v12
  // Predicated region
  $region2: #{healthcare_risk_predictor.1} parent=0 // pred_check
    _
  $region3: #{healthcare_risk_predictor.1} parent=0 // pred_check_branch
    %15 = sbr.rel (0) target = $region5
  $region4: #{healthcare_risk_predictor.1} parent=0 // pred_region
    _
  $region5: #{healthcare_risk_predictor.1} parent=0 // pred_fallthru
    _
  // Predicated region
  $region6: #{healthcare_risk_predictor.1} parent=0 // pred_check
    _
  $region7: #{healthcare_risk_predictor.1} parent=0 // pred_check_branch
    %17 = sbr.rel (0) target = $region9
  $region8: #{healthcare_risk_predictor.1} parent=0 // pred_region
    _
  $region9: #{healthcare_risk_predictor.1} parent=0 // pred_fallthru
    _
  // Predicated region
  $region10: #{healthcare_risk_predictor.1} parent=0 // pred_check
    _
  $region11: #{healthcare_risk_predictor.1} parent=0 // pred_check_branch
    %19 = sbr.rel (0) target = $region13
  $region12: #{healthcare_risk_predictor.1} parent=0 // pred_region
    _
  $region13: #{healthcare_risk_predictor.1} parent=0 // pred_fallthru
    _
  // Predicated region
  $region14: #{healthcare_risk_predictor.1} parent=0 // pred_check
    _
  $region15: #{healthcare_risk_predictor.1} parent=0 // pred_check_branch
    %21 = sbr.rel (0) target = $region17
  $region16: #{healthcare_risk_predictor.1} parent=0 // pred_region
    _
  $region17: #{healthcare_risk_predictor.1} parent=0 // pred_fallthru
    _
  // Predicated region
  $region18: #{healthcare_risk_predictor.1} parent=0 // pred_check
    _
  $region19: #{healthcare_risk_predictor.1} parent=0 // pred_check_branch
    %23 = sbr.rel (0) target = $region21
  $region20: #{healthcare_risk_predictor.1} parent=0 // pred_region
    _
  $region21: #{healthcare_risk_predictor.1} parent=0 // pred_fallthru
    _
  // Predicated region
  $region22: #{healthcare_risk_predictor.1} parent=0 // pred_check
    _
  $region23: #{healthcare_risk_predictor.1} parent=0 // pred_check_branch
    %25 = sbr.rel (0) target = $region25
  $region24: #{healthcare_risk_predictor.1} parent=0 // pred_region
    _
  $region25: #{healthcare_risk_predictor.1} parent=0 // pred_fallthru
    _
  // Predicated region
  $region26: #{healthcare_risk_predictor.1} parent=0 // pred_check
    _
  $region27: #{healthcare_risk_predictor.1} parent=0 // pred_check_branch
    %27 = sbr.rel (0) target = $region29
  $region28: #{healthcare_risk_predictor.1} parent=0 // pred_region
    _
  $region29: #{healthcare_risk_predictor.1} parent=0 // pred_fallthru
    _
  %v29 = vld [vmem:[%s1] sm:$0xf]
  %v30 = vld [vmem:[%s1 + $0x4] sm:$0xf]
  %v31 = vld [vmem:[%s1 + $0x8] sm:$0xf]
  %v32 = vld [vmem:[%s1 + $0xc] sm:$0xf]
  %v33 = vld [vmem:[%s2] sm:$0xff]
  %v34 = vld [vmem:[%s2 + $0x8] sm:$0xff]
  %v35 = vld [vmem:[%s2 + $0x10] sm:$0xff]
  %v36 = vld [vmem:[%s2 + $0x18] sm:$0xff]
  %v37 = vld [vmem:[%s3] sm:$0xf]
  %v38 = vld [vmem:[%s3 + $0x4] sm:$0xf]
  %v39 = vld [vmem:[%s3 + $0x8] sm:$0xf]
  %v40 = vld [vmem:[%s3 + $0xc] sm:$0xf]
  %v41 = vld [vmem:[%s4] sm:$0xff]
  %v42 = vld [vmem:[%s4 + $0x8] sm:$0xff]
  %v43 = vld [vmem:[%s4 + $0x10] sm:$0xff]
  %v44 = vld [vmem:[%s4 + $0x18] sm:$0xff]
  %v45 = vld [vmem:[%s5] sm:$0xff]
  %v46 = vld [vmem:[%s5 + $0x8] sm:$0xff]
  %v47 = vld [vmem:[%s5 + $0x10] sm:$0xff]
  %v48 = vld [vmem:[%s5 + $0x18] sm:$0xff]
  %v49 = vld [vmem:[#allocation2] sm:$0x1]
  %v50 = vld [vmem:[%s0] sm:$0xff]
  %v51 = vld [vmem:[%s0 + $0x8] sm:$0xff]
  %v52 = vld [vmem:[%s0 + $0x10] sm:$0xff]
  %v53 = vld [vmem:[%s0 + $0x18] sm:$0xff]
  %v54 = vld [vmem:[%s0 + $0x20] sm:$0xff]
  %v55 = vld [vmem:[%s0 + $0x28] sm:$0xff]
  %v56 = vld [vmem:[%s0 + $0x30] sm:$0xff]
  %v57 = vld [vmem:[%s0 + $0x38] sm:$0xff]
  %v58 = vld [vmem:[%s0 + $0x40] sm:$0xff]
  %v59 = vld [vmem:[%s0 + $0x48] sm:$0xff]
  %v60 = vld [vmem:[%s0 + $0x50] sm:$0xff]
  %v61 = vld [vmem:[%s0 + $0x58] sm:$0xff]
  %v62 = vld [vmem:[%s0 + $0x60] sm:$0xff]
  %v63 = vld [vmem:[%s0 + $0x68] sm:$0xff]
  %v64 = vld [vmem:[%s0 + $0x70] sm:$0xff]
  %v65 = vld [vmem:[%s0 + $0x78] sm:$0xff]
  %v66 = vpack.c.bf16 %v51, %v50
  %v67 = vpack.c.bf16 %v53, %v52
  %v68 = vpack.c.bf16 %v55, %v54
  %v69 = vpack.c.bf16 %v57, %v56
  %v70 = vpack.c.bf16 %v59, %v58
  %v71 = vpack.c.bf16 %v61, %v60
  %v72 = vpack.c.bf16 %v63, %v62
  %v73 = vpack.c.bf16 %v65, %v64
  %75 = vset.pattern.permute.xlu0 0
  %76 = vperm.xlu0 %75, %v33
  %v77 = vpop.permute.xlu0 %76
  %80 = vset.pattern.permute.xlu0 0
  %81 = vperm.xlu0 %80, %v34
  %v82 = vpop.permute.xlu0 %81
  %85 = vset.pattern.permute.xlu0 0
  %86 = vperm.xlu0 %85, %v35
  %v87 = vpop.permute.xlu0 %86
  %90 = vset.pattern.permute.xlu0 0
  %91 = vperm.xlu0 %90, %v36
  %v92 = vpop.permute.xlu0 %91
  %v98 = vunpack.c.l.b16 %v29
  %v99 = vunpack.c.l.b16 %v30
  %v100 = vunpack.c.l.b16 %v31
  %v101 = vunpack.c.l.b16 %v32
  %v102 = vpack.c.b16 %v99, %v98
  %v103 = vpack.c.b16 %v101, %v100
  %vm104 = vcmask 130048
  %v106 = vsel %vm104, %v102, 0
  %v109 = vsel %vm104, %v103, 0
  %v112 = vsel %vm104, %v66, 0
  %v115 = vsel %vm104, %v67, 0
  %v118 = vsel %vm104, %v68, 0
  %v121 = vsel %vm104, %v69, 0
  %v124 = vsel %vm104, %v70, 0
  %v127 = vsel %vm104, %v71, 0
  %v130 = vsel %vm104, %v72, 0
  %v133 = vsel %vm104, %v73, 0
  %135 = vmatprep.subr.bf16.mxu0 0
  %136 = vmatpush1.bf16.xpose.msra.mxu0 %v133
  %137 = vmatprep.subr.bf16.mxu0 0
  %138 = vmatpush1.bf16.xpose.msra.mxu0 %v130
  %139 = vmatprep.subr.bf16.mxu0 0
  %140 = vmatpush1.bf16.xpose.msra.mxu0 %v127
  %141 = vmatprep.subr.bf16.mxu0 0
  %142 = vmatpush1.bf16.xpose.msra.mxu0 %v124
  %143 = vmatprep.subr.bf16.mxu0 0
  %144 = vmatpush1.bf16.xpose.msra.mxu0 %v121
  %145 = vmatprep.subr.bf16.mxu0 0
  %146 = vmatpush1.bf16.xpose.msra.mxu0 %v118
  %147 = vmatprep.subr.bf16.mxu0 0
  %148 = vmatpush1.bf16.xpose.msra.mxu0 %v115
  %149 = vmatprep.subr.bf16.mxu0 0
  %150 = vmatpush1.bf16.xpose.msra.mxu0 %v112
  %151 = vmatprep.subr.bf16.mxu0 0
  %152 = vmatpush2.bf16.xpose.msra.mxu0 0
  %153 = vmatprep.subr.bf16.mxu0 0
  %154 = vmatpush2.bf16.xpose.msra.mxu0 0
  %155 = vmatprep.subr.bf16.mxu0 0
  %156 = vmatpush2.bf16.xpose.msra.mxu0 0
  %157 = vmatprep.subr.bf16.mxu0 0
  %158 = vmatpush2.bf16.xpose.msra.mxu0 0
  %159 = vmatprep.subr.bf16.mxu0 0
  %160 = vmatpush2.bf16.xpose.msra.mxu0 0
  %161 = vmatprep.subr.bf16.mxu0 0
  %162 = vmatpush2.bf16.xpose.msra.mxu0 0
  %163 = vmatprep.subr.bf16.mxu0 0
  %164 = vmatpush2.bf16.xpose.msra.mxu0 0
  %165 = vmatprep.subr.bf16.mxu0 0
  %166 = vmatpush2.bf16.xpose.msra.mxu0 0
  %167 = vmatprep.mubr.bf16.mxu0 0
  %168 = vmatmul.mubr.bf16.gmra.mxu0 %v106
  %v169 = vpop.f32.mrf.mxu0
  %v170 = vadd.f32 %v77, %v169
  %v171 = vpop.f32.mrf.mxu0
  %v172 = vpop.f32.mrf.mxu0
  %v173 = vadd.f32 %v82, %v172
  %v174 = vpop.f32.mrf.mxu0
  %175 = vmatprep.mubr.bf16.mxu0 0
  %176 = vmatmul.mubr.bf16.gmra.mxu0 %v109
  %v177 = vpop.f32.mrf.mxu0
  %v178 = vadd.f32 %v87, %v177
  %v179 = vpop.f32.mrf.mxu0
  %v180 = vpop.f32.mrf.mxu0
  %v181 = vadd.f32 %v92, %v180
  %v182 = vpop.f32.mrf.mxu0
  %183 = vdwg.mxu0
  %v184 = vmax.f32 %v170, 0.0
  %v185 = vmax.f32 %v173, 0.0
  %v186 = vmax.f32 %v178, 0.0
  %v187 = vmax.f32 %v181, 0.0
  %v188 = vpack.c.bf16 %v185, %v184
  %v189 = vpack.c.bf16 %v187, %v186
  %191 = vset.pattern.permute.xlu0 0
  %192 = vperm.xlu0 %191, %v41
  %v193 = vpop.permute.xlu0 %192
  %196 = vset.pattern.permute.xlu0 0
  %197 = vperm.xlu0 %196, %v42
  %v198 = vpop.permute.xlu0 %197
  %201 = vset.pattern.permute.xlu0 0
  %202 = vperm.xlu0 %201, %v43
  %v203 = vpop.permute.xlu0 %202
  %206 = vset.pattern.permute.xlu0 0
  %207 = vperm.xlu0 %206, %v44
  %v208 = vpop.permute.xlu0 %207
  %v214 = vunpack.c.l.b16 %v37
  %v215 = vunpack.c.l.b16 %v38
  %v216 = vunpack.c.l.b16 %v39
  %v217 = vunpack.c.l.b16 %v40
  %v218 = vpack.c.b16 %v215, %v214
  %v219 = vpack.c.b16 %v217, %v216
  %vm220 = vcmask 261120
  %v222 = vsel %vm220, %v218, 0
  %v225 = vsel %vm220, %v219, 0
  %227 = vmatprep.subr.bf16.mxu0 0
  %228 = vmatpush1.bf16.msra.mxu0 0
  %229 = vmatprep.subr.bf16.mxu0 0
  %230 = vmatpush1.bf16.msra.mxu0 0
  %231 = vmatprep.subr.bf16.mxu0 0
  %232 = vmatpush1.bf16.msra.mxu0 0
  %233 = vmatprep.subr.bf16.mxu0 0
  %234 = vmatpush1.bf16.msra.mxu0 0
  %235 = vmatprep.subr.bf16.mxu0 0
  %236 = vmatpush1.bf16.msra.mxu0 0
  %237 = vmatprep.subr.bf16.mxu0 0
  %238 = vmatpush1.bf16.msra.mxu0 0
  %239 = vmatprep.subr.bf16.mxu0 0
  %240 = vmatpush1.bf16.msra.mxu0 %v189
  %241 = vmatprep.subr.bf16.mxu0 0
  %242 = vmatpush1.bf16.msra.mxu0 %v188
  %243 = vmatprep.subr.bf16.mxu0 0
  %244 = vmatpush2.bf16.msra.mxu0 0
  %245 = vmatprep.subr.bf16.mxu0 0
  %246 = vmatpush2.bf16.msra.mxu0 0
  %247 = vmatprep.subr.bf16.mxu0 0
  %248 = vmatpush2.bf16.msra.mxu0 0
  %249 = vmatprep.subr.bf16.mxu0 0
  %250 = vmatpush2.bf16.msra.mxu0 0
  %251 = vmatprep.subr.bf16.mxu0 0
  %252 = vmatpush2.bf16.msra.mxu0 0
  %253 = vmatprep.subr.bf16.mxu0 0
  %254 = vmatpush2.bf16.msra.mxu0 0
  %255 = vmatprep.subr.bf16.mxu0 0
  %256 = vmatpush2.bf16.msra.mxu0 0
  %257 = vmatprep.subr.bf16.mxu0 0
  %258 = vmatpush2.bf16.msra.mxu0 0
  %259 = vmatprep.mubr.bf16.mxu0 0
  %260 = vmatmul.mubr.bf16.gmra.mxu0 %v222
  %v261 = vpop.f32.mrf.mxu0
  %v262 = vadd.f32 %v193, %v261
  %v263 = vpop.f32.mrf.mxu0
  %v264 = vpop.f32.mrf.mxu0
  %v265 = vadd.f32 %v198, %v264
  %v266 = vpop.f32.mrf.mxu0
  %267 = vmatprep.mubr.bf16.mxu0 0
  %268 = vmatmul.mubr.bf16.gmra.mxu0 %v225
  %v269 = vpop.f32.mrf.mxu0
  %v270 = vadd.f32 %v203, %v269
  %v271 = vpop.f32.mrf.mxu0
  %v272 = vpop.f32.mrf.mxu0
  %v273 = vadd.f32 %v208, %v272
  %v274 = vpop.f32.mrf.mxu0
  %275 = vdwg.mxu0
  %v276 = vmax.f32 %v262, 0.0
  %v277 = vmax.f32 %v265, 0.0
  %v278 = vmax.f32 %v270, 0.0
  %v279 = vmax.f32 %v273, 0.0
  %281 = vset.pattern.permute.xlu0 0
  %282 = vperm.xlu0 %281, %v45
  %v283 = vpop.permute.xlu0 %282
  %286 = vset.pattern.permute.xlu0 0
  %287 = vperm.xlu0 %286, %v46
  %v288 = vpop.permute.xlu0 %287
  %291 = vset.pattern.permute.xlu0 0
  %292 = vperm.xlu0 %291, %v47
  %v293 = vpop.permute.xlu0 %292
  %296 = vset.pattern.permute.xlu0 0
  %297 = vperm.xlu0 %296, %v48
  %v298 = vpop.permute.xlu0 %297
  %v300 = vmul.f32 %v276, %v283
  %v301 = vmul.f32 %v277, %v288
  %v302 = vmul.f32 %v278, %v293
  %v303 = vmul.f32 %v279, %v298
  %v304 = vadd.f32 %v300, %v301
  %v305 = vadd.f32 %v304, %v302
  %v306 = vadd.f32 %v305, %v303
  %v307 = vrot.slane %v306, 4
  %v308 = vadd.f32 %v306, %v307
  %v309 = vrot.slane %v308, 2
  %v310 = vadd.f32 %v308, %v309
  %v311 = vrot.slane %v310, 1
  %v312 = vadd.f32 %v310, %v311
  %314 = vset.pattern.permute.xlu0 0
  %315 = vperm.xlu0 %314, %v49
  %v316 = vpop.permute.xlu0 %315
  %v318 = vlaneseq
  %v319 = vshrl.u32 %v318, 7
  %v320 = vsub.s32 0, %v319
  %v321 = vrot.slane %v316, %v320
  %v322 = vadd.f32 %v312, %v321
  %v323 = vsub.f32 0.0, %v322
  %v324 = vmul.f32 %v323, 1.442695
  %v325 = vpow.pop %v324
  %v326 = vadd.f32 %v325, 1.0
  %v327 = vrcp.pop %v326
  %v328 = vmul.f32 1.0, %v327
  %329 = vst [vmem:[%s7] sm:$0x1] %v328
  // Predicated region
  $region30: #{healthcare_risk_predictor.1} parent=0 // pred_check
    _
  $region31: #{healthcare_risk_predictor.1} parent=0 // pred_check_branch
    %331 = sbr.rel (0) target = $region33
  $region32: #{healthcare_risk_predictor.1} parent=0 // pred_region
    _
  $region33: #{healthcare_risk_predictor.1} parent=0 // pred_fallthru
    _
  // Predicated region
  $region34: #{healthcare_risk_predictor.1} parent=0 // pred_check
    _
  $region35: #{healthcare_risk_predictor.1} parent=0 // pred_check_branch
    %333 = sbr.rel (0) target = $region37
  $region36: #{healthcare_risk_predictor.1} parent=0 // pred_region
    _
  $region37: #{healthcare_risk_predictor.1} parent=0 // pred_fallthru
    _

</llo_original>
